<compile_context>
chip_gen: v7x
topology: tpu7x:2x2x1
jax: 0.10.0
libtpu: 0.0.40
codegen_flags: <defaults>
</compile_context>

<pallas_src>
import functools

import numpy as np
import jax
import jax.numpy as jnp
from jax import lax
from jax.experimental import pallas as pl
from jax.experimental.pallas import tpu as pltpu


# Flip to jnp.bfloat16 on v6e/v7x for ~2x MXU throughput (accumulation stays f32 via
# preferred_element_type).  Kept at f32 here to preserve 1e-4 parity with PyTorch.
_MATMUL_DTYPE = jnp.float32


def _same_pad(L_in, stride, k):
    """MyConv1dPadSame padding math: returns (pad_left, out_dim)."""
    out_dim = -(-L_in // stride)  # ceil
    p = max(0, (out_dim - 1) * stride + k - L_in)
    return p // 2, out_dim


def _basic_block_kernel(x_ref, bn1s_ref, bn1b_ref, w1_ref, b1_ref,
                        bn2s_ref, bn2b_ref, w2_ref, b2_ref, o_ref, pad_ref,
                        *, K, conv_stride, downsample, use_bn, is_first_block,
                        C_in, C_out, L):
    """One batch element: channels-last (L, C) math, im2col convs, NCL store."""
    f32 = jnp.float32
    mm = _MATMUL_DTYPE

    def im2col_matmul(taps, w_mat, b_row):
        # taps: K arrays (out_dim, C) -> single MXU matmul with contraction K*C.
        patches = jnp.concatenate(taps, axis=1) if len(taps) > 1 else taps[0]
        return jnp.dot(patches.astype(mm), w_mat.astype(mm),
                       preferred_element_type=jnp.float32) + b_row

    def conv_same_s1(h, w_mat, b_row):
        # stride-1 SAME conv: contiguous value slices of a zero-padded copy.
        L_in, C = h.shape
        pad_l, out_dim = _same_pad(L_in, 1, K)
        pad_r = (K - 1) - pad_l
        parts = []
        if pad_l > 0:
            parts.append(jnp.zeros((pad_l, C), f32))
        parts.append(h)
        if pad_r > 0:
            parts.append(jnp.zeros((pad_r, C), f32))
        hp = parts[0] if len(parts) == 1 else jnp.concatenate(parts, axis=0)
        taps = [hp[k:k + out_dim, :] for k in range(K)]
        return im2col_matmul(taps, w_mat, b_row)

    def conv_same_strided(h, w_mat, b_row, pad_l, out_dim):
        # stride > 1: stage zero-padded rows in VMEM scratch, read each tap with a
        # sublane-strided pl.ds slice (replaces the old selection-matrix gathers).
        pad_ref[...] = jnp.zeros_like(pad_ref)
        pad_ref[pad_l:pad_l + L, :] = h
        taps = [pad_ref[pl.ds(k, out_dim, stride=conv_stride), :] for k in range(K)]
        return im2col_matmul(taps, w_mat, b_row)

    def maxpool_same(h, pk, out_dim):
        # MyMaxPool1dPadSame: zero SAME pad, pool stride == pk.  Pure VPU maxima
        # over pk sublane-strided taps (no MXU, no selection matrices).
        pad_l = (pk - 1) // 2
        pad_ref[...] = jnp.zeros_like(pad_ref)
        pad_ref[pad_l:pad_l + L, :] = h
        res = pad_ref[pl.ds(0, out_dim, stride=pk), :]
        for k in range(1, pk):
            res = jnp.maximum(res, pad_ref[pl.ds(k, out_dim, stride=pk), :])
        return res

    x = x_ref[0].astype(f32).T                       # (L, C_in), channels on lanes
    h = x
    if not is_first_block:
        if use_bn:
            h = h * bn1s_ref[...] + bn1b_ref[...]    # inference-mode BN1
        h = jnp.maximum(h, 0.0)                      # relu1 (dropout = identity)

    pad_l1, out1 = _same_pad(L, conv_stride, K)
    if conv_stride == 1:
        h = conv_same_s1(h, w1_ref[...], b1_ref[...])
    else:
        h = conv_same_strided(h, w1_ref[...], b1_ref[...], pad_l1, out1)

    if use_bn:
        h = h * bn2s_ref[...] + bn2b_ref[...]        # inference-mode BN2
    h = jnp.maximum(h, 0.0)                          # relu2 (dropout = identity)
    h = conv_same_s1(h, w2_ref[...], b2_ref[...])

    # identity / shortcut path
    ident = x
    if downsample and conv_stride > 1:
        ident = maxpool_same(ident, conv_stride, out1)
    if C_out != C_in:
        ch1 = (C_out - C_in) // 2
        ch2 = C_out - C_in - ch1
        rows = ident.shape[0]
        parts = []
        if ch1 > 0:
            parts.append(jnp.zeros((rows, ch1), f32))
        parts.append(ident)
        if ch2 > 0:
            parts.append(jnp.zeros((rows, ch2), f32))
        ident = jnp.concatenate(parts, axis=1)       # zero-pad channels (no matmul)

    o_ref[0] = (h + ident).T.astype(o_ref.dtype)     # native (C_out, L_out), L on lanes


def _im2col_weight(w, c_in, groups, k):
    """(C_out, C_in//groups, K) -> block-diagonal (K*C_in, C_out) im2col matrix."""
    c_out = w.shape[0]
    cig = c_in // groups
    cog = c_out // groups
    wm = jnp.zeros((k, c_in, c_out), jnp.float32)
    for g in range(groups):
        blk = jnp.transpose(w[g * cog:(g + 1) * cog].astype(jnp.float32), (2, 1, 0))
        wm = wm.at[:, g * cig:(g + 1) * cig, g * cog:(g + 1) * cog].set(blk)
    return wm.reshape(k * c_in, c_out)


def basic_block_forward(x, params, *, kernel_size, stride, groups, downsample,
                        use_bn, use_do, is_first_block):
    """x: (N, C_in, L) float32 (PyTorch NCL). Returns (N, C_out, L_out)."""
    del use_do  # dropout is eval-mode identity
    N, C_in, L = x.shape
    conv_stride = stride if downsample else 1
    C_out = params["w2"].shape[0]
    eps = 1e-5

    bn1_scale = params["bn1_gamma"] / jnp.sqrt(params["bn1_var"] + eps)
    bn1_shift = params["bn1_beta"] - params["bn1_mean"] * bn1_scale
    bn2_scale = params["bn2_gamma"] / jnp.sqrt(params["bn2_var"] + eps)
    bn2_shift = params["bn2_beta"] - params["bn2_mean"] * bn2_scale

    w1_mat = _im2col_weight(params["w1"], C_in, groups, kernel_size)
    w2_mat = _im2col_weight(params["w2"], C_out, groups, kernel_size)

    pad_l1, L_out = _same_pad(L, conv_stride, kernel_size)

    # Rows of the VMEM scratch that stages the zero-padded conv1 / pool inputs.
    rows = 8
    if conv_stride > 1:
        rows = max(rows, pad_l1 + L, (L_out - 1) * conv_stride + kernel_size)
        pad_lp = (conv_stride - 1) // 2
        rows = max(rows, pad_lp + L, L_out * conv_stride)

    # Explicit VMEM budget: double-buffered in/out blocks + weights + in-kernel
    # temporaries (im2col patches, transposes, padded copies), with headroom.
    act_bytes = 4 * (C_in * L + C_out * L_out)
    w_bytes = 4 * (kernel_size * C_in * C_out + kernel_size * C_out * C_out
                   + 2 * (C_in + 2 * C_out))
    tmp_bytes = 4 * (kernel_size + 6) * max(C_in, C_out) * max(L, L_out)
    vmem_limit = 4 * act_bytes + 2 * w_bytes + tmp_bytes + (8 << 20)
    try:
        vmem_cap = int(pltpu.get_tpu_info().vmem_capacity_bytes)
    except Exception:
        vmem_cap = 64 << 20                      # conservative (v7x per-core VMEM)
    vmem_limit = int(min(max(vmem_limit, 16 << 20), (vmem_cap * 3) // 4))

    kern = functools.partial(
        _basic_block_kernel, K=kernel_size, conv_stride=conv_stride,
        downsample=downsample, use_bn=use_bn, is_first_block=is_first_block,
        C_in=C_in, C_out=C_out, L=L)

    row2 = lambda n: (0, 0)
    out = pl.pallas_call(
        kern,
        out_shape=jax.ShapeDtypeStruct((N, C_out, L_out), jnp.float32),
        grid_spec=pltpu.PrefetchScalarGridSpec(
            num_scalar_prefetch=0,
            grid=(N,),
            in_specs=[
                pl.BlockSpec((1, C_in, L), lambda n: (n, 0, 0)),
                pl.BlockSpec((1, C_in), row2),
                pl.BlockSpec((1, C_in), row2),
                pl.BlockSpec((kernel_size * C_in, C_out), row2),
                pl.BlockSpec((1, C_out), row2),
                pl.BlockSpec((1, C_out), row2),
                pl.BlockSpec((1, C_out), row2),
                pl.BlockSpec((kernel_size * C_out, C_out), row2),
                pl.BlockSpec((1, C_out), row2),
            ],
            out_specs=pl.BlockSpec((1, C_out, L_out), lambda n: (n, 0, 0)),
            scratch_shapes=[pltpu.VMEM((rows, C_in), jnp.float32)],
        ),
        compiler_params=pltpu.CompilerParams(
            dimension_semantics=("parallel",),
            vmem_limit_bytes=vmem_limit),
    )(x.astype(jnp.float32),
      bn1_scale.reshape(1, C_in), bn1_shift.reshape(1, C_in),
      w1_mat, params["b1"].reshape(1, C_out).astype(jnp.float32),
      bn2_scale.reshape(1, C_out), bn2_shift.reshape(1, C_out),
      w2_mat, params["b2"].reshape(1, C_out).astype(jnp.float32))
    return out


def _ref_forward(x, params, *, kernel_size, stride, groups, downsample,
                 use_bn, use_do, is_first_block):
    """Pure-JAX reference (same inference-mode semantics), NCL layout."""
    del use_do
    eps = 1e-5
    conv_stride = stride if downsample else 1
    C_in = x.shape[1]
    C_out = params["w2"].shape[0]

    def bn(h, g, b, m, v):
        return ((h - m[None, :, None]) / jnp.sqrt(v[None, :, None] + eps)
                * g[None, :, None] + b[None, :, None])

    def conv_same(h, w, b, s):
        L_in = h.shape[-1]
        k = w.shape[-1]
        out_dim = -(-L_in // s)
        p = max(0, (out_dim - 1) * s + k - L_in)
        hp = jnp.pad(h, ((0, 0), (0, 0), (p // 2, p - p // 2)))
        o = lax.conv_general_dilated(hp, w, (s,), "VALID",
                                     dimension_numbers=("NCH", "OIH", "NCH"),
                                     feature_group_count=groups)
        return o + b[None, :, None]

    def maxpool_same(h, pk):
        if pk <= 1:
            return h
        L_in = h.shape[-1]
        p = pk - 1
        hp = jnp.pad(h, ((0, 0), (0, 0), (p // 2, p - p // 2)))
        out_dim = -(-L_in // pk)
        hp = hp[:, :, :pk * out_dim]
        return hp.reshape(h.shape[0], h.shape[1], out_dim, pk).max(axis=-1)

    ident = x
    out = x
    if not is_first_block:
        if use_bn:
            out = bn(out, params["bn1_gamma"], params["bn1_beta"],
                     params["bn1_mean"], params["bn1_var"])
        out = jnp.maximum(out, 0.0)
    out = conv_same(out, params["w1"], params["b1"], conv_stride)
    if use_bn:
        out = bn(out, params["bn2_gamma"], params["bn2_beta"],
                 params["bn2_mean"], params["bn2_var"])
    out = jnp.maximum(out, 0.0)
    out = conv_same(out, params["w2"], params["b2"], 1)
    if downsample:
        ident = maxpool_same(ident, conv_stride)
    if C_out != C_in:
        ch1 = (C_out - C_in) // 2
        ch2 = C_out - C_in - ch1
        ident = jnp.pad(ident, ((0, 0), (ch1, ch2), (0, 0)))
    return out + ident


def _make_params(key, C_in, C_out, K, groups):
    ks = jax.random.split(key, 12)
    return {
        "w1": 0.1 * jax.random.normal(ks[0], (C_out, C_in // groups, K), jnp.float32),
        "b1": 0.1 * jax.random.normal(ks[1], (C_out,), jnp.float32),
        "w2": 0.1 * jax.random.normal(ks[2], (C_out, C_out // groups, K), jnp.float32),
        "b2": 0.1 * jax.random.normal(ks[3], (C_out,), jnp.float32),
        "bn1_gamma": 1.0 + 0.1 * jax.random.normal(ks[4], (C_in,), jnp.float32),
        "bn1_beta": 0.1 * jax.random.normal(ks[5], (C_in,), jnp.float32),
        "bn1_mean": 0.1 * jax.random.normal(ks[6], (C_in,), jnp.float32),
        "bn1_var": 1.0 + 0.1 * jax.random.uniform(ks[7], (C_in,), jnp.float32),
        "bn2_gamma": 1.0 + 0.1 * jax.random.normal(ks[8], (C_out,), jnp.float32),
        "bn2_beta": 0.1 * jax.random.normal(ks[9], (C_out,), jnp.float32),
        "bn2_mean": 0.1 * jax.random.normal(ks[10], (C_out,), jnp.float32),
        "bn2_var": 1.0 + 0.1 * jax.random.uniform(ks[11], (C_out,), jnp.float32),
    }


if __name__ == "__main__":
    root = jax.random.PRNGKey(0)
    k1, k2, k3, k4 = jax.random.split(root, 4)

    # Config 1: downsampling block with channel expansion and grouped convs.
    N, C_in, C_out, L = 2, 4, 8, 16
    cfg1 = dict(kernel_size=3, stride=2, groups=2, downsample=True,
                use_bn=True, use_do=True, is_first_block=False)
    params1 = _make_params(k1, C_in, C_out, cfg1["kernel_size"], cfg1["groups"])
    x1 = jax.random.normal(k2, (N, C_in, L), jnp.float32)

    y1 = jax.block_until_ready(basic_block_forward(x1, params1, **cfg1))
    y1_ref = jax.block_until_ready(_ref_forward(x1, params1, **cfg1))
    np.testing.assert_allclose(np.asarray(y1), np.asarray(y1_ref),
                               rtol=1e-4, atol=1e-4)

    # Config 2: first block, stride 1, no downsample, equal channels.
    C2, L2 = 8, 16
    cfg2 = dict(kernel_size=5, stride=1, groups=1, downsample=False,
                use_bn=True, use_do=True, is_first_block=True)
    params2 = _make_params(k3, C2, C2, cfg2["kernel_size"], cfg2["groups"])
    x2 = jax.random.normal(k4, (N, C2, L2), jnp.float32)

    y2 = jax.block_until_ready(basic_block_forward(x2, params2, **cfg2))
    y2_ref = jax.block_until_ready(_ref_forward(x2, params2, **cfg2))
    np.testing.assert_allclose(np.asarray(y2), np.asarray(y2_ref),
                               rtol=1e-4, atol=1e-4)

    print("KERNEL_OK")
</pallas_src>

<mosaic_0001>
module attributes {stable_mosaic.version = 11 : i64} {
  func.func @_basic_block_kernel(%arg0: i32, %arg1: memref<1x4x16xf32, #tpu.memory_space<vmem>>, %arg2: memref<1x4xf32, #tpu.memory_space<vmem>>, %arg3: memref<1x4xf32, #tpu.memory_space<vmem>>, %arg4: memref<12x8xf32, #tpu.memory_space<vmem>>, %arg5: memref<1x8xf32, #tpu.memory_space<vmem>>, %arg6: memref<1x8xf32, #tpu.memory_space<vmem>>, %arg7: memref<1x8xf32, #tpu.memory_space<vmem>>, %arg8: memref<24x8xf32, #tpu.memory_space<vmem>>, %arg9: memref<1x8xf32, #tpu.memory_space<vmem>>, %arg10: memref<1x8x8xf32, #tpu.memory_space<vmem>>, %arg11: memref<17x4xf32, #tpu.memory_space<vmem>>) attributes {dimension_semantics = [#tpu.dimension_semantics<parallel>], iteration_bounds = array<i64: 2>, scalar_prefetch = 0 : i64, scratch_operands = 1 : i64, tpu.core_type = #tpu.core_type<tc>, window_params = [{transform_indices = @transform_0, window_bounds = array<i64: 1, 4, 16>}, {pipeline_mode = #tpu.pipeline_mode<synchronous>, transform_indices = @transform_1, window_bounds = array<i64: 1, 4>}, {pipeline_mode = #tpu.pipeline_mode<synchronous>, transform_indices = @transform_2, window_bounds = array<i64: 1, 4>}, {pipeline_mode = #tpu.pipeline_mode<synchronous>, transform_indices = @transform_3, window_bounds = array<i64: 12, 8>}, {pipeline_mode = #tpu.pipeline_mode<synchronous>, transform_indices = @transform_4, window_bounds = array<i64: 1, 8>}, {pipeline_mode = #tpu.pipeline_mode<synchronous>, transform_indices = @transform_5, window_bounds = array<i64: 1, 8>}, {pipeline_mode = #tpu.pipeline_mode<synchronous>, transform_indices = @transform_6, window_bounds = array<i64: 1, 8>}, {pipeline_mode = #tpu.pipeline_mode<synchronous>, transform_indices = @transform_7, window_bounds = array<i64: 24, 8>}, {pipeline_mode = #tpu.pipeline_mode<synchronous>, transform_indices = @transform_8, window_bounds = array<i64: 1, 8>}, {transform_indices = @transform_9, window_bounds = array<i64: 1, 8, 8>}]} {
    %c0 = arith.constant 0 : index
    %c0_0 = arith.constant 0 : index
    %c0_1 = arith.constant 0 : index
    %0 = vector.load %arg1[%c0, %c0_0, %c0_1] : memref<1x4x16xf32, #tpu.memory_space<vmem>>, vector<1x4x16xf32>
    %1 = vector.shape_cast %0 : vector<1x4x16xf32> to vector<4x16xf32>
    %2 = tpu.transpose %1, [1, 0] : vector<4x16xf32> -> vector<16x4xf32>
    %c0_2 = arith.constant 0 : index
    %c0_3 = arith.constant 0 : index
    %3 = vector.load %arg2[%c0_2, %c0_3] : memref<1x4xf32, #tpu.memory_space<vmem>>, vector<1x4xf32>
    %4 = vector.broadcast %3 : vector<1x4xf32> to vector<16x4xf32>
    %5 = arith.mulf %2, %4 : vector<16x4xf32>
    %c0_4 = arith.constant 0 : index
    %c0_5 = arith.constant 0 : index
    %6 = vector.load %arg3[%c0_4, %c0_5] : memref<1x4xf32, #tpu.memory_space<vmem>>, vector<1x4xf32>
    %7 = vector.broadcast %6 : vector<1x4xf32> to vector<16x4xf32>
    %8 = arith.addf %5, %7 : vector<16x4xf32>
    %cst = arith.constant 0.000000e+00 : f32
    %9 = vector.broadcast %cst : f32 to vector<16x4xf32>
    %10 = arith.maximumf %8, %9 : vector<16x4xf32>
    %c0_6 = arith.constant 0 : index
    %c0_7 = arith.constant 0 : index
    %11 = vector.load %arg4[%c0_6, %c0_7] : memref<12x8xf32, #tpu.memory_space<vmem>>, vector<12x8xf32>
    %c0_8 = arith.constant 0 : index
    %c0_9 = arith.constant 0 : index
    %12 = vector.load %arg5[%c0_8, %c0_9] : memref<1x8xf32, #tpu.memory_space<vmem>>, vector<1x8xf32>
    %cst_10 = arith.constant 0.000000e+00 : f32
    %13 = vector.broadcast %cst_10 : f32 to vector<17x4xf32>
    %c0_11 = arith.constant 0 : index
    %c0_12 = arith.constant 0 : index
    %14 = vector.load %arg11[%c0_11, %c0_12] : memref<17x4xf32, #tpu.memory_space<vmem>>, vector<17x4xf32>
    tpu.vector_store %arg11[%c0_11, %c0_12], %13 {strides = array<i32>} : memref<17x4xf32, #tpu.memory_space<vmem>>, vector<17x4xf32>,
    %c0_13 = arith.constant 0 : index
    %c0_14 = arith.constant 0 : index
    %15 = vector.load %arg11[%c0_13, %c0_14] : memref<17x4xf32, #tpu.memory_space<vmem>>, vector<16x4xf32>
    tpu.vector_store %arg11[%c0_13, %c0_14], %10 {strides = array<i32>} : memref<17x4xf32, #tpu.memory_space<vmem>>, vector<16x4xf32>,
    %c0_15 = arith.constant 0 : index
    %c0_16 = arith.constant 0 : index
    %16 = tpu.strided_load %arg11[%c0_15, %c0_16] {strides = array<i32: 2, 1>} : memref<17x4xf32, #tpu.memory_space<vmem>>, vector<8x4xf32>
    %c1 = arith.constant 1 : index
    %c0_17 = arith.constant 0 : index
    %17 = tpu.strided_load %arg11[%c1, %c0_17] {strides = array<i32: 2, 1>} : memref<17x4xf32, #tpu.memory_space<vmem>>, vector<8x4xf32>
    %c2 = arith.constant 2 : index
    %c0_18 = arith.constant 0 : index
    %18 = tpu.strided_load %arg11[%c2, %c0_18] {strides = array<i32: 2, 1>} : memref<17x4xf32, #tpu.memory_space<vmem>>, vector<8x4xf32>
    %19 = tpu.concatenate %16, %17, %18 in 1 : vector<8x4xf32>, vector<8x4xf32>, vector<8x4xf32> -> vector<8x12xf32>
    %cst_19 = arith.constant dense<0.000000e+00> : vector<8x8xf32>
    %20 = tpu.matmul %19, %11, %cst_19 {dimension_numbers = #tpu.dot_dimension_numbers<[1], [0], [0], [1], [0, 0, 1, 1], [], []>} : vector<8x12xf32>, vector<12x8xf32>, vector<8x8xf32> -> vector<8x8xf32>
    %21 = vector.broadcast %12 : vector<1x8xf32> to vector<8x8xf32>
    %22 = arith.addf %20, %21 : vector<8x8xf32>
    %c0_20 = arith.constant 0 : index
    %c0_21 = arith.constant 0 : index
    %23 = vector.load %arg6[%c0_20, %c0_21] : memref<1x8xf32, #tpu.memory_space<vmem>>, vector<1x8xf32>
    %24 = vector.broadcast %23 : vector<1x8xf32> to vector<8x8xf32>
    %25 = arith.mulf %22, %24 : vector<8x8xf32>
    %c0_22 = arith.constant 0 : index
    %c0_23 = arith.constant 0 : index
    %26 = vector.load %arg7[%c0_22, %c0_23] : memref<1x8xf32, #tpu.memory_space<vmem>>, vector<1x8xf32>
    %27 = vector.broadcast %26 : vector<1x8xf32> to vector<8x8xf32>
    %28 = arith.addf %25, %27 : vector<8x8xf32>
    %cst_24 = arith.constant 0.000000e+00 : f32
    %29 = vector.broadcast %cst_24 : f32 to vector<8x8xf32>
    %30 = arith.maximumf %28, %29 : vector<8x8xf32>
    %c0_25 = arith.constant 0 : index
    %c0_26 = arith.constant 0 : index
    %31 = vector.load %arg8[%c0_25, %c0_26] : memref<24x8xf32, #tpu.memory_space<vmem>>, vector<24x8xf32>
    %c0_27 = arith.constant 0 : index
    %c0_28 = arith.constant 0 : index
    %32 = vector.load %arg9[%c0_27, %c0_28] : memref<1x8xf32, #tpu.memory_space<vmem>>, vector<1x8xf32>
    %cst_29 = arith.constant 0.000000e+00 : f32
    %33 = vector.broadcast %cst_29 : f32 to vector<1x8xf32>
    %cst_30 = arith.constant 0.000000e+00 : f32
    %34 = vector.broadcast %cst_30 : f32 to vector<1x8xf32>
    %35 = tpu.concatenate %33, %30, %34 in 0 : vector<1x8xf32>, vector<8x8xf32>, vector<1x8xf32> -> vector<10x8xf32>
    %36 = vector.extract_strided_slice %35 {offsets = [0, 0], sizes = [8, 8], strides = [1, 1]} : vector<10x8xf32> to vector<8x8xf32>
    %37 = vector.extract_strided_slice %35 {offsets = [1, 0], sizes = [8, 8], strides = [1, 1]} : vector<10x8xf32> to vector<8x8xf32>
    %38 = vector.extract_strided_slice %35 {offsets = [2, 0], sizes = [8, 8], strides = [1, 1]} : vector<10x8xf32> to vector<8x8xf32>
    %39 = tpu.concatenate %36, %37, %38 in 1 : vector<8x8xf32>, vector<8x8xf32>, vector<8x8xf32> -> vector<8x24xf32>
    %cst_31 = arith.constant dense<0.000000e+00> : vector<8x8xf32>
    %40 = tpu.matmul %39, %31, %cst_31 {dimension_numbers = #tpu.dot_dimension_numbers<[1], [0], [0], [1], [0, 0, 1, 1], [], []>} : vector<8x24xf32>, vector<24x8xf32>, vector<8x8xf32> -> vector<8x8xf32>
    %41 = vector.broadcast %32 : vector<1x8xf32> to vector<8x8xf32>
    %42 = arith.addf %40, %41 : vector<8x8xf32>
    %cst_32 = arith.constant 0.000000e+00 : f32
    %43 = vector.broadcast %cst_32 : f32 to vector<17x4xf32>
    %c0_33 = arith.constant 0 : index
    %c0_34 = arith.constant 0 : index
    %44 = vector.load %arg11[%c0_33, %c0_34] : memref<17x4xf32, #tpu.memory_space<vmem>>, vector<17x4xf32>
    tpu.vector_store %arg11[%c0_33, %c0_34], %43 {strides = array<i32>} : memref<17x4xf32, #tpu.memory_space<vmem>>, vector<17x4xf32>,
    %c0_35 = arith.constant 0 : index
    %c0_36 = arith.constant 0 : index
    %45 = vector.load %arg11[%c0_35, %c0_36] : memref<17x4xf32, #tpu.memory_space<vmem>>, vector<16x4xf32>
    tpu.vector_store %arg11[%c0_35, %c0_36], %2 {strides = array<i32>} : memref<17x4xf32, #tpu.memory_space<vmem>>, vector<16x4xf32>,
    %c0_37 = arith.constant 0 : index
    %c0_38 = arith.constant 0 : index
    %46 = tpu.strided_load %arg11[%c0_37, %c0_38] {strides = array<i32: 2, 1>} : memref<17x4xf32, #tpu.memory_space<vmem>>, vector<8x4xf32>
    %c1_39 = arith.constant 1 : index
    %c0_40 = arith.constant 0 : index
    %47 = tpu.strided_load %arg11[%c1_39, %c0_40] {strides = array<i32: 2, 1>} : memref<17x4xf32, #tpu.memory_space<vmem>>, vector<8x4xf32>
    %48 = arith.maximumf %46, %47 : vector<8x4xf32>
    %cst_41 = arith.constant 0.000000e+00 : f32
    %49 = vector.broadcast %cst_41 : f32 to vector<8x2xf32>
    %cst_42 = arith.constant 0.000000e+00 : f32
    %50 = vector.broadcast %cst_42 : f32 to vector<8x2xf32>
    %51 = tpu.concatenate %49, %48, %50 in 1 : vector<8x2xf32>, vector<8x4xf32>, vector<8x2xf32> -> vector<8x8xf32>
    %52 = arith.addf %42, %51 : vector<8x8xf32>
    %53 = tpu.transpose %52, [1, 0] : vector<8x8xf32> -> vector<8x8xf32>
    %c0_43 = arith.constant 0 : index
    %c0_44 = arith.constant 0 : index
    %c0_45 = arith.constant 0 : index
    %54 = vector.load %arg10[%c0_43, %c0_44, %c0_45] : memref<1x8x8xf32, #tpu.memory_space<vmem>>, vector<1x8x8xf32>
    %55 = vector.shape_cast %54 : vector<1x8x8xf32> to vector<8x8xf32>
    %56 = vector.shape_cast %53 : vector<8x8xf32> to vector<1x8x8xf32>
    tpu.vector_store %arg10[%c0_43, %c0_44, %c0_45], %56 {strides = array<i32>} : memref<1x8x8xf32, #tpu.memory_space<vmem>>, vector<1x8x8xf32>,
    return
  }
  func.func @transform_0(%arg0: i32) -> (i32, i32, i32) {
    %c0_i32 = arith.constant 0 : i32
    %c0_i32_0 = arith.constant 0 : i32
    %c0_i32_1 = arith.constant 0 : i32
    return %arg0, %c0_i32, %c0_i32_0 : i32, i32, i32
  }
  func.func @transform_1(%arg0: i32) -> (i32, i32) {
    %c0_i32 = arith.constant 0 : i32
    %c0_i32_0 = arith.constant 0 : i32
    %c0_i32_1 = arith.constant 0 : i32
    return %c0_i32, %c0_i32_0 : i32, i32
  }
  func.func @transform_2(%arg0: i32) -> (i32, i32) {
    %c0_i32 = arith.constant 0 : i32
    %c0_i32_0 = arith.constant 0 : i32
    %c0_i32_1 = arith.constant 0 : i32
    return %c0_i32, %c0_i32_0 : i32, i32
  }
  func.func @transform_3(%arg0: i32) -> (i32, i32) {
    %c0_i32 = arith.constant 0 : i32
    %c0_i32_0 = arith.constant 0 : i32
    %c0_i32_1 = arith.constant 0 : i32
    return %c0_i32, %c0_i32_0 : i32, i32
  }
  func.func @transform_4(%arg0: i32) -> (i32, i32) {
    %c0_i32 = arith.constant 0 : i32
    %c0_i32_0 = arith.constant 0 : i32
    %c0_i32_1 = arith.constant 0 : i32
    return %c0_i32, %c0_i32_0 : i32, i32
  }
  func.func @transform_5(%arg0: i32) -> (i32, i32) {
    %c0_i32 = arith.constant 0 : i32
    %c0_i32_0 = arith.constant 0 : i32
    %c0_i32_1 = arith.constant 0 : i32
    return %c0_i32, %c0_i32_0 : i32, i32
  }
  func.func @transform_6(%arg0: i32) -> (i32, i32) {
    %c0_i32 = arith.constant 0 : i32
    %c0_i32_0 = arith.constant 0 : i32
    %c0_i32_1 = arith.constant 0 : i32
    return %c0_i32, %c0_i32_0 : i32, i32
  }
  func.func @transform_7(%arg0: i32) -> (i32, i32) {
    %c0_i32 = arith.constant 0 : i32
    %c0_i32_0 = arith.constant 0 : i32
    %c0_i32_1 = arith.constant 0 : i32
    return %c0_i32, %c0_i32_0 : i32, i32
  }
  func.func @transform_8(%arg0: i32) -> (i32, i32) {
    %c0_i32 = arith.constant 0 : i32
    %c0_i32_0 = arith.constant 0 : i32
    %c0_i32_1 = arith.constant 0 : i32
    return %c0_i32, %c0_i32_0 : i32, i32
  }
  func.func @transform_9(%arg0: i32) -> (i32, i32, i32) {
    %c0_i32 = arith.constant 0 : i32
    %c0_i32_0 = arith.constant 0 : i32
    %c0_i32_1 = arith.constant 0 : i32
    return %arg0, %c0_i32, %c0_i32_0 : i32, i32, i32
  }
}

</mosaic_0001>

<llo_original>
// kernel: tpu_custom_call.1
$region0: #{tpu_custom_call.1}
  #allocation0 [shape = 'u32[]', space=smem, size = 0x4, offset = 0x4, fixed_abs, tag = 'smem constant byte address 0x4 - core index']
  #allocation1 [shape = 'u32[144,128]{1,0:T(1,128)}', space=vmem, size = 0x12000, scoped, tag = 'internal scratch']
  #allocation2 [shape = 'f32[17,4]{1,0:T(8,128)}', space=vmem, size = 0x3000, scoped, tag = 'scratch operand']
  %s0 = inlined_call_operand.vmem [shape: f32[2,4,16], index: 0, kind: input, shape index: {}]
  %s1 = inlined_call_operand.vmem [shape: f32[1,4], index: 1, kind: input, shape index: {}]
  %s2 = inlined_call_operand.vmem [shape: f32[1,4], index: 2, kind: input, shape index: {}]
  %s3 = inlined_call_operand.vmem [shape: f32[12,8], index: 3, kind: input, shape index: {}]
  %s4 = inlined_call_operand.vmem [shape: f32[1,8], index: 4, kind: input, shape index: {}]
  %s5 = inlined_call_operand.vmem [shape: f32[1,8], index: 5, kind: input, shape index: {}]
  %s6 = inlined_call_operand.vmem [shape: f32[1,8], index: 6, kind: input, shape index: {}]
  %s7 = inlined_call_operand.vmem [shape: f32[24,8], index: 7, kind: input, shape index: {}]
  %s8 = inlined_call_operand.vmem [shape: f32[1,8], index: 8, kind: input, shape index: {}]
  %s9 = inlined_call_operand.hbm [shape: f32[2,8,8], index: 9, kind: output, shape index: {}]
  %s10 = sld [smem:[#allocation0]]
  $region69: #{tpu_custom_call.1} parent=0
    _
  %s12 = ssub.s32 1, %s10
  %s13 = scalar_select 0, %s12, %s10
  $region1: #{tpu_custom_call.1} parent=0
    #allocation3 [shape = 'u8[8192]{0}', space=vmem, size = 0x2000, scoped, tag = 'output window, operand 0']
    #allocation4 [shape = 's32[2]{0}', space=sflag, size = 0x8, scoped, tag = 'scoped memory for tpu_custom_call.1']
    %14 = vsyncpa [#allocation4], 0
    %s15 = scalar_lea.sflag [#allocation4], 1
    %16 = vsyncpa %s15, 0
    loop: start=0, step=1, limit=4
    $region2: #{tpu_custom_call.1} parent=1 // loop_pre_header
      _
    $region3: #{tpu_custom_call.1} parent=1 // loop_header
      %s18 = sphi 0, %s22
      %p19 = scmp.ge.s32.totalorder %s18, 4
      %s28 = sphi 0, %s30
      %s31 = sphi 0, %s28
      %s32 = sphi 0, %s31
      %s48 = sphi 0, %s32
      %s52 = sphi 0, %s52
      %s54 = sphi 0, %s52
      %s55 = sphi 0, %s54
      %s69 = sphi 0, %s55
      %s73 = sphi 0, %s73
      %s75 = sphi 0, %s73
      %s76 = sphi 0, %s75
      %s90 = sphi 0, %s76
      %s94 = sphi 0, %s94
      %s96 = sphi 0, %s94
      %s97 = sphi 0, %s96
      %s111 = sphi 0, %s97
      %s115 = sphi 0, %s115
      %s117 = sphi 0, %s115
      %s118 = sphi 0, %s117
      %s132 = sphi 0, %s118
      %s136 = sphi 0, %s136
      %s138 = sphi 0, %s136
      %s139 = sphi 0, %s138
      %s153 = sphi 0, %s139
      %s157 = sphi 0, %s157
      %s159 = sphi 0, %s157
      %s160 = sphi 0, %s159
      %s174 = sphi 0, %s160
      %s178 = sphi 0, %s178
      %s180 = sphi 0, %s178
      %s181 = sphi 0, %s180
      %s195 = sphi 0, %s181
      %s199 = sphi 0, %s199
      %s201 = sphi 0, %s199
      %s202 = sphi 0, %s201
      %s216 = sphi 0, %s202
      %s222 = sphi 0, %s224
      %s225 = sphi 0, %s222
      %s226 = sphi 0, %s225
      %s242 = sphi 0, %s226
    $region4: #{tpu_custom_call.1} parent=1 // loop_header_branch
      %21 = sbr.rel (%p19) target = $region8
    $region5: #{tpu_custom_call.1} parent=1 // loop_body
      %s23 = ssub.s32 %s18, 1
      %s24 = ssub.s32 %s18, 2
      %s25 = sadd.s32 %s18, 1
      %s26 = ssub.s32 %s18, %s25
      %p27 = scmp.eq.s32.totalorder %s26, 0
      %s29 = sadd.s32 %s28, 1
      %s30 = scalar_select %p27, %s28, %s29
      %p33 = pneg %p27
      %p34 = scmp.eq.s32.totalorder %s18, 1
      %p35 = por %p33, %p34
      %p36 = scmp.ne.s32.totalorder %s28, %s31
      %p37 = scmp.eq.s32.totalorder %s18, 0
      %p38 = por %p36, %p37
      %p39 = scmp.ne.s32.totalorder %s28, %s31
      %p40 = scmp.eq.s32.totalorder %s23, 1
      %p41 = por %p39, %p40
      %p42 = scmp.ne.s32.totalorder %s31, %s32
      %p43 = scmp.eq.s32.totalorder %s23, 0
      %p44 = por %p42, %p43
      %p45 = scmp.ne.s32.totalorder %s31, %s32
      %p46 = scmp.eq.s32.totalorder %s24, 1
      %p47 = por %p45, %p46
      %p49 = scmp.ne.s32.totalorder %s32, %s48
      %p50 = scmp.eq.s32.totalorder %s24, 0
      %p51 = por %p49, %p50
      %s53 = sadd.s32 %s52, 1
      %p56 = scmp.eq.s32.totalorder %s18, 1
      %p57 = scmp.ne.s32.totalorder %s52, %s54
      %p58 = scmp.eq.s32.totalorder %s18, 0
      %p59 = por %p57, %p58
      %p60 = scmp.ne.s32.totalorder %s52, %s54
      %p61 = scmp.eq.s32.totalorder %s23, 1
      %p62 = por %p60, %p61
      %p63 = scmp.ne.s32.totalorder %s54, %s55
      %p64 = scmp.eq.s32.totalorder %s23, 0
      %p65 = por %p63, %p64
      %p66 = scmp.ne.s32.totalorder %s54, %s55
      %p67 = scmp.eq.s32.totalorder %s24, 1
      %p68 = por %p66, %p67
      %p70 = scmp.ne.s32.totalorder %s55, %s69
      %p71 = scmp.eq.s32.totalorder %s24, 0
      %p72 = por %p70, %p71
      %s74 = sadd.s32 %s73, 1
      %p77 = scmp.eq.s32.totalorder %s18, 1
      %p78 = scmp.ne.s32.totalorder %s73, %s75
      %p79 = scmp.eq.s32.totalorder %s18, 0
      %p80 = por %p78, %p79
      %p81 = scmp.ne.s32.totalorder %s73, %s75
      %p82 = scmp.eq.s32.totalorder %s23, 1
      %p83 = por %p81, %p82
      %p84 = scmp.ne.s32.totalorder %s75, %s76
      %p85 = scmp.eq.s32.totalorder %s23, 0
      %p86 = por %p84, %p85
      %p87 = scmp.ne.s32.totalorder %s75, %s76
      %p88 = scmp.eq.s32.totalorder %s24, 1
      %p89 = por %p87, %p88
      %p91 = scmp.ne.s32.totalorder %s76, %s90
      %p92 = scmp.eq.s32.totalorder %s24, 0
      %p93 = por %p91, %p92
      %s95 = sadd.s32 %s94, 1
      %p98 = scmp.eq.s32.totalorder %s18, 1
      %p99 = scmp.ne.s32.totalorder %s94, %s96
      %p100 = scmp.eq.s32.totalorder %s18, 0
      %p101 = por %p99, %p100
      %p102 = scmp.ne.s32.totalorder %s94, %s96
      %p103 = scmp.eq.s32.totalorder %s23, 1
      %p104 = por %p102, %p103
      %p105 = scmp.ne.s32.totalorder %s96, %s97
      %p106 = scmp.eq.s32.totalorder %s23, 0
      %p107 = por %p105, %p106
      %p108 = scmp.ne.s32.totalorder %s96, %s97
      %p109 = scmp.eq.s32.totalorder %s24, 1
      %p110 = por %p108, %p109
      %p112 = scmp.ne.s32.totalorder %s97, %s111
      %p113 = scmp.eq.s32.totalorder %s24, 0
      %p114 = por %p112, %p113
      %s116 = sadd.s32 %s115, 1
      %p119 = scmp.eq.s32.totalorder %s18, 1
      %p120 = scmp.ne.s32.totalorder %s115, %s117
      %p121 = scmp.eq.s32.totalorder %s18, 0
      %p122 = por %p120, %p121
      %p123 = scmp.ne.s32.totalorder %s115, %s117
      %p124 = scmp.eq.s32.totalorder %s23, 1
      %p125 = por %p123, %p124
      %p126 = scmp.ne.s32.totalorder %s117, %s118
      %p127 = scmp.eq.s32.totalorder %s23, 0
      %p128 = por %p126, %p127
      %p129 = scmp.ne.s32.totalorder %s117, %s118
      %p130 = scmp.eq.s32.totalorder %s24, 1
      %p131 = por %p129, %p130
      %p133 = scmp.ne.s32.totalorder %s118, %s132
      %p134 = scmp.eq.s32.totalorder %s24, 0
      %p135 = por %p133, %p134
      %s137 = sadd.s32 %s136, 1
      %p140 = scmp.eq.s32.totalorder %s18, 1
      %p141 = scmp.ne.s32.totalorder %s136, %s138
      %p142 = scmp.eq.s32.totalorder %s18, 0
      %p143 = por %p141, %p142
      %p144 = scmp.ne.s32.totalorder %s136, %s138
      %p145 = scmp.eq.s32.totalorder %s23, 1
      %p146 = por %p144, %p145
      %p147 = scmp.ne.s32.totalorder %s138, %s139
      %p148 = scmp.eq.s32.totalorder %s23, 0
      %p149 = por %p147, %p148
      %p150 = scmp.ne.s32.totalorder %s138, %s139
      %p151 = scmp.eq.s32.totalorder %s24, 1
      %p152 = por %p150, %p151
      %p154 = scmp.ne.s32.totalorder %s139, %s153
      %p155 = scmp.eq.s32.totalorder %s24, 0
      %p156 = por %p154, %p155
      %s158 = sadd.s32 %s157, 1
      %p161 = scmp.eq.s32.totalorder %s18, 1
      %p162 = scmp.ne.s32.totalorder %s157, %s159
      %p163 = scmp.eq.s32.totalorder %s18, 0
      %p164 = por %p162, %p163
      %p165 = scmp.ne.s32.totalorder %s157, %s159
      %p166 = scmp.eq.s32.totalorder %s23, 1
      %p167 = por %p165, %p166
      %p168 = scmp.ne.s32.totalorder %s159, %s160
      %p169 = scmp.eq.s32.totalorder %s23, 0
      %p170 = por %p168, %p169
      %p171 = scmp.ne.s32.totalorder %s159, %s160
      %p172 = scmp.eq.s32.totalorder %s24, 1
      %p173 = por %p171, %p172
      %p175 = scmp.ne.s32.totalorder %s160, %s174
      %p176 = scmp.eq.s32.totalorder %s24, 0
      %p177 = por %p175, %p176
      %s179 = sadd.s32 %s178, 1
      %p182 = scmp.eq.s32.totalorder %s18, 1
      %p183 = scmp.ne.s32.totalorder %s178, %s180
      %p184 = scmp.eq.s32.totalorder %s18, 0
      %p185 = por %p183, %p184
      %p186 = scmp.ne.s32.totalorder %s178, %s180
      %p187 = scmp.eq.s32.totalorder %s23, 1
      %p188 = por %p186, %p187
      %p189 = scmp.ne.s32.totalorder %s180, %s181
      %p190 = scmp.eq.s32.totalorder %s23, 0
      %p191 = por %p189, %p190
      %p192 = scmp.ne.s32.totalorder %s180, %s181
      %p193 = scmp.eq.s32.totalorder %s24, 1
      %p194 = por %p192, %p193
      %p196 = scmp.ne.s32.totalorder %s181, %s195
      %p197 = scmp.eq.s32.totalorder %s24, 0
      %p198 = por %p196, %p197
      %s200 = sadd.s32 %s199, 1
      %p203 = scmp.eq.s32.totalorder %s18, 1
      %p204 = scmp.ne.s32.totalorder %s199, %s201
      %p205 = scmp.eq.s32.totalorder %s18, 0
      %p206 = por %p204, %p205
      %p207 = scmp.ne.s32.totalorder %s199, %s201
      %p208 = scmp.eq.s32.totalorder %s23, 1
      %p209 = por %p207, %p208
      %p210 = scmp.ne.s32.totalorder %s201, %s202
      %p211 = scmp.eq.s32.totalorder %s23, 0
      %p212 = por %p210, %p211
      %p213 = scmp.ne.s32.totalorder %s201, %s202
      %p214 = scmp.eq.s32.totalorder %s24, 1
      %p215 = por %p213, %p214
      %p217 = scmp.ne.s32.totalorder %s202, %s216
      %p218 = scmp.eq.s32.totalorder %s24, 0
      %p219 = por %p217, %p218
      %s220 = ssub.s32 %s18, %s25
      %p221 = scmp.eq.s32.totalorder %s220, 0
      %s223 = sadd.s32 %s222, 1
      %s224 = scalar_select %p221, %s222, %s223
      %p227 = pneg %p221
      %p228 = scmp.eq.s32.totalorder %s18, 1
      %p229 = por %p227, %p228
      %p230 = scmp.ne.s32.totalorder %s222, %s225
      %p231 = scmp.eq.s32.totalorder %s18, 0
      %p232 = por %p230, %p231
      %p233 = scmp.ne.s32.totalorder %s222, %s225
      %p234 = scmp.eq.s32.totalorder %s23, 1
      %p235 = por %p233, %p234
      %p236 = scmp.ne.s32.totalorder %s225, %s226
      %p237 = scmp.eq.s32.totalorder %s23, 0
      %p238 = por %p236, %p237
      %p239 = scmp.ne.s32.totalorder %s225, %s226
      %p240 = scmp.eq.s32.totalorder %s24, 1
      %p241 = por %p239, %p240
      %p243 = scmp.ne.s32.totalorder %s226, %s242
      %p244 = scmp.eq.s32.totalorder %s24, 0
      %p245 = por %p243, %p244
      %p246 = scmp.le.s32.totalorder 1, %s18
      %p247 = scmp.lt.s32.totalorder %s18, 3
      %p248 = pnand %p246, %p247
      %p249 = pneg %p248
      // Predicated region
      $region9: #{tpu_custom_call.1} parent=5 // pred_check
        _
      $region10: #{tpu_custom_call.1} parent=5 // pred_check_branch
        %251 = sbr.rel (%p248) target = $region12
      $region11: #{tpu_custom_call.1} parent=5 // pred_region
        %s252 = ssub.s32 %s18, 1
        // Predicated region
        $region13: #{tpu_custom_call.1} parent=11 // pred_check
          %p253 = pneg %p65
        $region14: #{tpu_custom_call.1} parent=11 // pred_check_branch
          %255 = sbr.rel (%p253) target = $region16
        $region15: #{tpu_custom_call.1} parent=11 // pred_region
          _
        $region16: #{tpu_custom_call.1} parent=11 // pred_fallthru
          _
        // Predicated region
        $region17: #{tpu_custom_call.1} parent=11 // pred_check
          %p256 = pneg %p86
        $region18: #{tpu_custom_call.1} parent=11 // pred_check_branch
          %258 = sbr.rel (%p256) target = $region20
        $region19: #{tpu_custom_call.1} parent=11 // pred_region
          _
        $region20: #{tpu_custom_call.1} parent=11 // pred_fallthru
          _
        // Predicated region
        $region21: #{tpu_custom_call.1} parent=11 // pred_check
          %p259 = pneg %p107
        $region22: #{tpu_custom_call.1} parent=11 // pred_check_branch
          %261 = sbr.rel (%p259) target = $region24
        $region23: #{tpu_custom_call.1} parent=11 // pred_region
          _
        $region24: #{tpu_custom_call.1} parent=11 // pred_fallthru
          _
        // Predicated region
        $region25: #{tpu_custom_call.1} parent=11 // pred_check
          %p262 = pneg %p128
        $region26: #{tpu_custom_call.1} parent=11 // pred_check_branch
          %264 = sbr.rel (%p262) target = $region28
        $region27: #{tpu_custom_call.1} parent=11 // pred_region
          _
        $region28: #{tpu_custom_call.1} parent=11 // pred_fallthru
          _
        // Predicated region
        $region29: #{tpu_custom_call.1} parent=11 // pred_check
          %p265 = pneg %p149
        $region30: #{tpu_custom_call.1} parent=11 // pred_check_branch
          %267 = sbr.rel (%p265) target = $region32
        $region31: #{tpu_custom_call.1} parent=11 // pred_region
          _
        $region32: #{tpu_custom_call.1} parent=11 // pred_fallthru
          _
        // Predicated region
        $region33: #{tpu_custom_call.1} parent=11 // pred_check
          %p268 = pneg %p170
        $region34: #{tpu_custom_call.1} parent=11 // pred_check_branch
          %270 = sbr.rel (%p268) target = $region36
        $region35: #{tpu_custom_call.1} parent=11 // pred_region
          _
        $region36: #{tpu_custom_call.1} parent=11 // pred_fallthru
          _
        // Predicated region
        $region37: #{tpu_custom_call.1} parent=11 // pred_check
          %p271 = pneg %p191
        $region38: #{tpu_custom_call.1} parent=11 // pred_check_branch
          %273 = sbr.rel (%p271) target = $region40
        $region39: #{tpu_custom_call.1} parent=11 // pred_region
          _
        $region40: #{tpu_custom_call.1} parent=11 // pred_fallthru
          _
        // Predicated region
        $region41: #{tpu_custom_call.1} parent=11 // pred_check
          %p274 = pneg %p212
        $region42: #{tpu_custom_call.1} parent=11 // pred_check_branch
          %276 = sbr.rel (%p274) target = $region44
        $region43: #{tpu_custom_call.1} parent=11 // pred_region
          _
        $region44: #{tpu_custom_call.1} parent=11 // pred_fallthru
          _
      $region12: #{tpu_custom_call.1} parent=5 // pred_fallthru
        _
      %p277 = scmp.lt.s32.totalorder %s18, 2
      // Predicated region
      $region45: #{tpu_custom_call.1} parent=5 // pred_check
        %p278 = pneg %p277
      $region46: #{tpu_custom_call.1} parent=5 // pred_check_branch
        %280 = sbr.rel (%p278) target = $region48
      $region47: #{tpu_custom_call.1} parent=5 // pred_region
        // Predicated region
        $region49: #{tpu_custom_call.1} parent=47 // pred_check
          %p281 = pneg %p38
        $region50: #{tpu_custom_call.1} parent=47 // pred_check_branch
          %283 = sbr.rel (%p281) target = $region52
        $region51: #{tpu_custom_call.1} parent=47 // pred_region
          %p284 = scmp.lt.s32.totalorder %s18, 1
          %s285 = scalar_select %p284, %s18, 1
          %s286 = smul.addr %s285, 4
          %s287 = scalar_lea.vmem %s0, %s286
        $region52: #{tpu_custom_call.1} parent=47 // pred_fallthru
          _
      $region48: #{tpu_custom_call.1} parent=5 // pred_fallthru
        _
      %p288 = scmp.le.s32.totalorder 1, %s18
      %p289 = scmp.lt.s32.totalorder %s18, 3
      %p290 = pnand %p288, %p289
      %p291 = pneg %p290
      // Predicated region
      $region53: #{tpu_custom_call.1} parent=5 // pred_check
        _
      $region54: #{tpu_custom_call.1} parent=5 // pred_check_branch
        %293 = sbr.rel (%p290) target = $region56
      $region55: #{tpu_custom_call.1} parent=5 // pred_region
        %s294 = ssub.s32 %s18, 1
        %p295 = scmp.lt.s32.totalorder %s23, 1
        %s296 = scalar_select %p295, %s23, 1
        %s297 = smul.addr %s296, 4
        %s298 = scalar_lea.vmem %s0, %s297
        %p299 = pneg %p44
        %p300 = pneg %p41
        %p301 = pneg %p65
        %p302 = pneg %p62
        %p303 = pneg %p86
        %p304 = pneg %p83
        %p305 = pneg %p107
        %p306 = pneg %p104
        %p307 = pneg %p128
        %p308 = pneg %p125
        %p309 = pneg %p149
        %p310 = pneg %p146
        %p311 = pneg %p170
        %p312 = pneg %p167
        %p313 = pneg %p191
        %p314 = pneg %p188
        %p315 = pneg %p212
        %p316 = pneg %p209
        %p317 = pneg %p238
        %p318 = pneg %p235
        %s319 = sand.u32 %s225, 1
        %s320 = scalar_lea.sflag [#allocation4], %s319
        %s321 = sand.u32 %s225, 1
        %s322 = smul.addr %s321, 8
        %s323 = scalar_lea.vmem [#allocation3], %s322
        %p324 = scmp.lt.s32.totalorder %s23, 1
        %s325 = scalar_select %p324, %s23, 1
        %s326 = smul.addr %s325, 4
        %s327 = scalar_lea.vmem %s0, %s326
        %v328 = vld [vmem:[%s327] sm:$0xf]
        %329 = vxpose.xlu0.b32.start [1/16] %v328, 128
        %330 = vxpose.xlu0.b32.cont [2/16] 0.0, 128
        %331 = vxpose.xlu0.b32.cont [3/16] 0.0, 128
        %332 = vxpose.xlu0.b32.cont [4/16] 0.0, 128
        %333 = vxpose.xlu0.b32.cont [5/16] 0.0, 128
        %334 = vxpose.xlu0.b32.cont [6/16] 0.0, 128
        %335 = vxpose.xlu0.b32.cont [7/16] 0.0, 128
        %336 = vxpose.xlu0.b32.cont [8/16] 0.0, 128
        %337 = vxpose.xlu0.b32.cont [9/16] 0.0, 128
        %338 = vxpose.xlu0.b32.cont [10/16] 0.0, 128
        %339 = vxpose.xlu0.b32.cont [11/16] 0.0, 128
        %340 = vxpose.xlu0.b32.cont [12/16] 0.0, 128
        %341 = vxpose.xlu0.b32.cont [13/16] 0.0, 128
        %342 = vxpose.xlu0.b32.cont [14/16] 0.0, 128
        %343 = vxpose.xlu0.b32.cont [15/16] 0.0, 128
        %344 = vxpose.xlu0.b32.end [16/16] 0.0, 128
        %v345 = vpop.trf.xlu0
        %v346 = vpop.trf.xlu0
        %v347 = vpop.trf.xlu0
        %v348 = vpop.trf.xlu0
        %v349 = vpop.trf.xlu0
        %v350 = vpop.trf.xlu0
        %v351 = vpop.trf.xlu0
        %v352 = vpop.trf.xlu0
        %v353 = vpop.trf.xlu0
        %v354 = vpop.trf.xlu0
        %v355 = vpop.trf.xlu0
        %v356 = vpop.trf.xlu0
        %v357 = vpop.trf.xlu0
        %v358 = vpop.trf.xlu0
        %v359 = vpop.trf.xlu0
        %v360 = vpop.trf.xlu0
        %v361 = vld [vmem:[%s1] sm:$0x1]
        %v363 = vlaneseq
        %v364 = vshrl.u32 %v363, 7
        %v365 = vsub.s32 0, %v364
        %v366 = vrot.slane %v361, %v365
        %v368 = vmul.f32 %v345, %v366
        %v369 = vmul.f32 %v346, %v366
        %v370 = vld [vmem:[%s2] sm:$0x1]
        %v372 = vlaneseq
        %v373 = vshrl.u32 %v372, 7
        %v374 = vsub.s32 0, %v373
        %v375 = vrot.slane %v370, %v374
        %v377 = vadd.f32 %v368, %v375
        %v378 = vadd.f32 %v369, %v375
        %v379 = vmax.f32 %v377, 0.0
        %v380 = vmax.f32 %v378, 0.0
        %v381 = vld [vmem:[%s3] sm:$0xff]
        %v382 = vld [vmem:[%s3 + $0x8] sm:$0xf]
        %v383 = vld [vmem:[%s4] sm:$0x1]
        %vm384 = vcmask 31744
        %385 = vst.msk [vmem:[#allocation2] sm:$0xff] %vm384, 0.0
        %386 = vst.msk [vmem:[#allocation2 + $0x8] sm:$0xff] %vm384, 0.0
        %vm387 = vcmask 24576
        %388 = vst.msk [vmem:[#allocation2 + $0x10] sm:$0x1] %vm387, 0.0
        %389 = vst.msk [vmem:[#allocation2] sm:$0xff] %vm384, %v379
        %390 = vst.msk [vmem:[#allocation2 + $0x8] sm:$0xff] %vm384, %v380
        %v391 = vld [vmem:[#allocation2] ss:$2 sm:$0xff]
        %s392 = scalar_lea.vmem [#allocation2], 1
        %v393 = vld [vmem:[%s392] ss:$2 sm:$0xff]
        %s394 = scalar_lea.vmem [#allocation2], 2
        %v395 = vld [vmem:[%s394] ss:$2 sm:$0xff]
        %397 = vrot.lane.b32.xlu0 %v393, 4
        %v398 = vpop.permute.xlu0 %397
        %401 = vrot.lane.b32.xlu0 %v395, 8
        %v402 = vpop.permute.xlu0 %401
        %v404 = vsel %vm384, %v391, %v398
        %vm405 = vcmask 64512
        %v406 = vsel %vm405, %v404, %v402
        %v408 = vlaneseq
        %v409 = vshrl.u32 %v408, 7
        %v410 = vsub.s32 0, %v409
        %v411 = vrot.slane %v383, %v410
        %vm413 = vcmask 97280
        %v415 = vsel %vm413, %v406, 0
        %vm417 = vcmask 1043456
        %v419 = vsel %vm417, %v382, 0
        %421 = vmatprep.subr.mxu0 0.0
        %422 = vmatpush1.msra.mxu0 %v381
        %423 = vmatprep.subr.mxu0 0.0
        %424 = vmatpush1.msra.mxu0 %v419
        %425 = vmatprep.subr.mxu0 0.0
        %426 = vmatpush1.msra.mxu0 0.0
        %427 = vmatprep.subr.mxu0 0.0
        %428 = vmatpush1.msra.mxu0 0.0
        %429 = vmatprep.subr.mxu0 0.0
        %430 = vmatpush1.msra.mxu0 0.0
        %431 = vmatprep.subr.mxu0 0.0
        %432 = vmatpush1.msra.mxu0 0.0
        %433 = vmatprep.subr.mxu0 0.0
        %434 = vmatpush1.msra.mxu0 0.0
        %435 = vmatprep.subr.mxu0 0.0
        %436 = vmatpush1.msra.mxu0 0.0
        %437 = vmatprep.subr.mxu0 0.0
        %438 = vmatpush1.msra.mxu0 0.0
        %439 = vmatprep.subr.mxu0 0.0
        %440 = vmatpush1.msra.mxu0 0.0
        %441 = vmatprep.subr.mxu0 0.0
        %442 = vmatpush1.msra.mxu0 0.0
        %443 = vmatprep.subr.mxu0 0.0
        %444 = vmatpush1.msra.mxu0 0.0
        %445 = vmatprep.subr.mxu0 0.0
        %446 = vmatpush1.msra.mxu0 0.0
        %447 = vmatprep.subr.mxu0 0.0
        %448 = vmatpush1.msra.mxu0 0.0
        %449 = vmatprep.subr.mxu0 0.0
        %450 = vmatpush1.msra.mxu0 0.0
        %451 = vmatprep.subr.mxu0 0.0
        %452 = vmatpush1.msra.mxu0 0.0
        %453 = vmatprep.subr.mxu0 0.0
        %454 = vmatpush1.msra.mxu0 0.0
        %455 = vmatprep.subr.mxu0 0.0
        %456 = vmatpush1.msra.mxu0 0.0
        %457 = vmatprep.subr.mxu0 0.0
        %458 = vmatpush1.msra.mxu0 0.0
        %459 = vmatprep.subr.mxu0 0.0
        %460 = vmatpush1.msra.mxu0 0.0
        %461 = vmatprep.subr.mxu0 0.0
        %462 = vmatpush1.msra.mxu0 0.0
        %463 = vmatprep.subr.mxu0 0.0
        %464 = vmatpush1.msra.mxu0 0.0
        %465 = vmatprep.subr.mxu0 0.0
        %466 = vmatpush1.msra.mxu0 0.0
        %467 = vmatprep.subr.mxu0 0.0
        %468 = vmatpush1.msra.mxu0 0.0
        %469 = vmatprep.subr.mxu0 0.0
        %470 = vmatpush1.msra.mxu0 0.0
        %471 = vmatprep.subr.mxu0 0.0
        %472 = vmatpush1.msra.mxu0 0.0
        %473 = vmatprep.subr.mxu0 0.0
        %474 = vmatpush1.msra.mxu0 0.0
        %475 = vmatprep.subr.mxu0 0.0
        %476 = vmatpush1.msra.mxu0 0.0
        %477 = vmatprep.subr.mxu0 0.0
        %478 = vmatpush1.msra.mxu0 0.0
        %479 = vmatprep.subr.mxu0 0.0
        %480 = vmatpush1.msra.mxu0 0.0
        %481 = vmatprep.subr.mxu0 0.0
        %482 = vmatpush1.msra.mxu0 0.0
        %483 = vmatprep.subr.mxu0 0.0
        %484 = vmatpush1.msra.mxu0 0.0
        %485 = vmatprep.mubr.f32.mxu0 0.0
        %486 = vmatmul.mubr.f32.gmra.mrb[0].mxu0 %v415
        %v487 = vpop.f32.mrb[0].mxu0
        %v488 = vadd.f32 %v411, %v487
        %v489 = vpop.f32.mrb[0].mxu0
        %490 = vdwg.mxu0
        %v491 = vld [vmem:[%s5] sm:$0x1]
        %v493 = vlaneseq
        %v494 = vshrl.u32 %v493, 7
        %v495 = vsub.s32 0, %v494
        %v496 = vrot.slane %v491, %v495
        %v498 = vmul.f32 %v488, %v496
        %v499 = vld [vmem:[%s6] sm:$0x1]
        %v501 = vlaneseq
        %v502 = vshrl.u32 %v501, 7
        %v503 = vsub.s32 0, %v502
        %v504 = vrot.slane %v499, %v503
        %v506 = vadd.f32 %v498, %v504
        %v507 = vmax.f32 %v506, 0.0
        %v508 = vld [vmem:[%s7] sm:$0xff]
        %v509 = vld [vmem:[%s7 + $0x8] sm:$0xff]
        %v510 = vld [vmem:[%s7 + $0x10] sm:$0xff]
        %v511 = vld [vmem:[%s8] sm:$0x1]
        %v513 = vrot.slane %v507, 7
        %vm515 = vcmask 1040384
        %v516 = vsel %vm515, 0.0, %v513
        %v517 = vsel %vm515, %v513, 0.0
        %vm520 = vcmask 1046528
        %v521 = vrot.slane %v516, 1
        %v522 = vrot.slane %v517, 1
        %v523 = vsel %vm520, %v521, %v522
        %524 = vrot.lane.b32.xlu0 %v523, 8
        %v525 = vpop.permute.xlu0 %524
        %vm527 = vcmask 1045504
        %v528 = vrot.slane %v516, 2
        %v529 = vrot.slane %v517, 2
        %v530 = vsel %vm527, %v528, %v529
        %531 = vrot.lane.b32.xlu0 %v530, 16
        %v532 = vpop.permute.xlu0 %531
        %v534 = vsel %vm405, %v516, %v525
        %vm535 = vcmask 130048
        %v536 = vsel %vm535, %v534, %v532
        %v538 = vlaneseq
        %v539 = vshrl.u32 %v538, 7
        %v540 = vsub.s32 0, %v539
        %v541 = vrot.slane %v511, %v540
        %vm543 = vcmask 195584
        %v545 = vsel %vm543, %v536, 0
        %547 = vmatprep.subr.mxu0 0.0
        %548 = vmatpush1.msra.mxu0 %v508
        %549 = vmatprep.subr.mxu0 0.0
        %550 = vmatpush1.msra.mxu0 %v509
        %551 = vmatprep.subr.mxu0 0.0
        %552 = vmatpush1.msra.mxu0 %v510
        %553 = vmatprep.subr.mxu0 0.0
        %554 = vmatpush1.msra.mxu0 0.0
        %555 = vmatprep.subr.mxu0 0.0
        %556 = vmatpush1.msra.mxu0 0.0
        %557 = vmatprep.subr.mxu0 0.0
        %558 = vmatpush1.msra.mxu0 0.0
        %559 = vmatprep.subr.mxu0 0.0
        %560 = vmatpush1.msra.mxu0 0.0
        %561 = vmatprep.subr.mxu0 0.0
        %562 = vmatpush1.msra.mxu0 0.0
        %563 = vmatprep.subr.mxu0 0.0
        %564 = vmatpush1.msra.mxu0 0.0
        %565 = vmatprep.subr.mxu0 0.0
        %566 = vmatpush1.msra.mxu0 0.0
        %567 = vmatprep.subr.mxu0 0.0
        %568 = vmatpush1.msra.mxu0 0.0
        %569 = vmatprep.subr.mxu0 0.0
        %570 = vmatpush1.msra.mxu0 0.0
        %571 = vmatprep.subr.mxu0 0.0
        %572 = vmatpush1.msra.mxu0 0.0
        %573 = vmatprep.subr.mxu0 0.0
        %574 = vmatpush1.msra.mxu0 0.0
        %575 = vmatprep.subr.mxu0 0.0
        %576 = vmatpush1.msra.mxu0 0.0
        %577 = vmatprep.subr.mxu0 0.0
        %578 = vmatpush1.msra.mxu0 0.0
        %579 = vmatprep.subr.mxu0 0.0
        %580 = vmatpush1.msra.mxu0 0.0
        %581 = vmatprep.subr.mxu0 0.0
        %582 = vmatpush1.msra.mxu0 0.0
        %583 = vmatprep.subr.mxu0 0.0
        %584 = vmatpush1.msra.mxu0 0.0
        %585 = vmatprep.subr.mxu0 0.0
        %586 = vmatpush1.msra.mxu0 0.0
        %587 = vmatprep.subr.mxu0 0.0
        %588 = vmatpush1.msra.mxu0 0.0
        %589 = vmatprep.subr.mxu0 0.0
        %590 = vmatpush1.msra.mxu0 0.0
        %591 = vmatprep.subr.mxu0 0.0
        %592 = vmatpush1.msra.mxu0 0.0
        %593 = vmatprep.subr.mxu0 0.0
        %594 = vmatpush1.msra.mxu0 0.0
        %595 = vmatprep.subr.mxu0 0.0
        %596 = vmatpush1.msra.mxu0 0.0
        %597 = vmatprep.subr.mxu0 0.0
        %598 = vmatpush1.msra.mxu0 0.0
        %599 = vmatprep.subr.mxu0 0.0
        %600 = vmatpush1.msra.mxu0 0.0
        %601 = vmatprep.subr.mxu0 0.0
        %602 = vmatpush1.msra.mxu0 0.0
        %603 = vmatprep.subr.mxu0 0.0
        %604 = vmatpush1.msra.mxu0 0.0
        %605 = vmatprep.subr.mxu0 0.0
        %606 = vmatpush1.msra.mxu0 0.0
        %607 = vmatprep.subr.mxu0 0.0
        %608 = vmatpush1.msra.mxu0 0.0
        %609 = vmatprep.subr.mxu0 0.0
        %610 = vmatpush1.msra.mxu0 0.0
        %611 = vmatprep.mubr.f32.mxu0 0.0
        %612 = vmatmul.mubr.f32.gmra.mrb[0].mxu0 %v545
        %v613 = vpop.f32.mrb[0].mxu0
        %v614 = vadd.f32 %v541, %v613
        %v615 = vpop.f32.mrb[0].mxu0
        %616 = vdwg.mxu0
        %617 = vst.msk [vmem:[#allocation2] sm:$0xff] %vm384, 0.0
        %618 = vst.msk [vmem:[#allocation2 + $0x8] sm:$0xff] %vm384, 0.0
        %619 = vst.msk [vmem:[#allocation2 + $0x10] sm:$0x1] %vm387, 0.0
        %620 = vst.msk [vmem:[#allocation2] sm:$0xff] %vm384, %v345
        %621 = vst.msk [vmem:[#allocation2 + $0x8] sm:$0xff] %vm384, %v346
        %v622 = vld [vmem:[#allocation2] ss:$2 sm:$0xff]
        %v623 = vld [vmem:[%s392] ss:$2 sm:$0xff]
        %v624 = vmax.f32 %v622, %v623
        %626 = vrot.lane.b32.xlu0 %v624, 2
        %v627 = vpop.permute.xlu0 %626
        %vm629 = vcmask 15360
        %v630 = vsel %vm629, 0.0, %v627
        %vm631 = vcmask 48128
        %v632 = vsel %vm631, %v630, 0.0
        %v633 = vadd.f32 %v614, %v632
        %634 = vxpose.xlu0.b32.start [1/16] %v633, 128
        %635 = vxpose.xlu0.b32.cont [2/16] 0.0, 128
        %636 = vxpose.xlu0.b32.cont [3/16] 0.0, 128
        %637 = vxpose.xlu0.b32.cont [4/16] 0.0, 128
        %638 = vxpose.xlu0.b32.cont [5/16] 0.0, 128
        %639 = vxpose.xlu0.b32.cont [6/16] 0.0, 128
        %640 = vxpose.xlu0.b32.cont [7/16] 0.0, 128
        %641 = vxpose.xlu0.b32.cont [8/16] 0.0, 128
        %642 = vxpose.xlu0.b32.cont [9/16] 0.0, 128
        %643 = vxpose.xlu0.b32.cont [10/16] 0.0, 128
        %644 = vxpose.xlu0.b32.cont [11/16] 0.0, 128
        %645 = vxpose.xlu0.b32.cont [12/16] 0.0, 128
        %646 = vxpose.xlu0.b32.cont [13/16] 0.0, 128
        %647 = vxpose.xlu0.b32.cont [14/16] 0.0, 128
        %648 = vxpose.xlu0.b32.cont [15/16] 0.0, 128
        %649 = vxpose.xlu0.b32.end [16/16] 0.0, 128
        %v650 = vpop.trf.xlu0
        %v651 = vpop.trf.xlu0
        %v652 = vpop.trf.xlu0
        %v653 = vpop.trf.xlu0
        %v654 = vpop.trf.xlu0
        %v655 = vpop.trf.xlu0
        %v656 = vpop.trf.xlu0
        %v657 = vpop.trf.xlu0
        %v658 = vpop.trf.xlu0
        %v659 = vpop.trf.xlu0
        %v660 = vpop.trf.xlu0
        %v661 = vpop.trf.xlu0
        %v662 = vpop.trf.xlu0
        %v663 = vpop.trf.xlu0
        %v664 = vpop.trf.xlu0
        %v665 = vpop.trf.xlu0
        %666 = vst.msk [vmem:[%s323] sm:$0xff] %vm405, %v650
        %s667 = sand.u32 %s225, 1
        %s668 = scalar_lea.sflag [#allocation4], %s667
        %s669 = sand.u32 %s225, 1
        %s670 = smul.addr %s669, 8
        %s671 = scalar_lea.vmem [#allocation3], %s670
        // Predicated region
        $region57: #{tpu_custom_call.1} parent=55 // pred_check
          %p672 = pneg %p235
        $region58: #{tpu_custom_call.1} parent=55 // pred_check_branch
          %674 = sbr.rel (%p672) target = $region60
        $region59: #{tpu_custom_call.1} parent=55 // pred_region
          %s676 = ssub.s32 128, 128
          %677 = vsyncadd %s668, %s676
          %s678 = smul.addr %s23, 128
          %s679 = scalar_lea.hbm %s9, %s678
          %s681 = sshll.u32 %s671, 4
          %s682 = int_to_ptr.vmem [resolvable:$true] %s681
          %684 = dma.vmem_to_hbm [thread:$0]  %s682, 128, %s679, %s668
        $region60: #{tpu_custom_call.1} parent=55 // pred_fallthru
          _
      $region56: #{tpu_custom_call.1} parent=5 // pred_fallthru
        _
      %p685 = scmp.le.s32.totalorder 2, %s18
      // Predicated region
      $region61: #{tpu_custom_call.1} parent=5 // pred_check
        %p686 = pneg %p685
      $region62: #{tpu_custom_call.1} parent=5 // pred_check_branch
        %688 = sbr.rel (%p686) target = $region64
      $region63: #{tpu_custom_call.1} parent=5 // pred_region
        %s689 = ssub.s32 %s18, 2
        // Predicated region
        $region65: #{tpu_custom_call.1} parent=63 // pred_check
          %p690 = pneg %p241
        $region66: #{tpu_custom_call.1} parent=63 // pred_check_branch
          %692 = sbr.rel (%p690) target = $region68
        $region67: #{tpu_custom_call.1} parent=63 // pred_region
          %s693 = sand.u32 %s226, 1
          %s694 = scalar_lea.sflag [#allocation4], %s693
          %s695 = sand.u32 %s226, 1
          %s696 = smul.addr %s695, 8
          %s697 = scalar_lea.vmem [#allocation3], %s696
          %698 = dma.done %s694, 128
        $region68: #{tpu_custom_call.1} parent=63 // pred_fallthru
          _
      $region64: #{tpu_custom_call.1} parent=5 // pred_fallthru
        _
    $region6: #{tpu_custom_call.1} parent=1 // loop_footer
      %s22 = sadd.s32 1, %s18
    $region7: #{tpu_custom_call.1} parent=1 // loop_footer_branch
      %17 = sbr.rel target = $region3
    $region8: #{tpu_custom_call.1} parent=1 // loop_exit
      _
    %699 = vsyncpa [#allocation4], 1
    %s700 = scalar_lea.sflag [#allocation4], 1
    %701 = vsyncpa %s700, 1

</llo_original>
